<compile_context>
chip_gen: v6e
topology: v6e:2x2x1
jax: 0.10.0
libtpu: 0.0.40
codegen_flags: <defaults>
</compile_context>

<pallas_src>
import math

import jax
import jax.numpy as jnp
from jax.experimental import pallas as pl
from jax.experimental.pallas import tpu as pltpu


def _round_up(x, m):
    return -(-x // m) * m


def _vmem_capacity_bytes():
    try:
        return int(pltpu.get_tpu_info().vmem_capacity_bytes)
    except Exception:
        return 64 << 20  # conservative default: v7x has 64 MiB VMEM per TensorCore


def _make_kernel(bt, cin, cout, groups, k, stride, dilation, lt, hp):
    cin_g = cin // groups
    cout_g = cout // groups
    kcin = k * cin_g

    def kernel(xm_ref, xh_ref, w_ref, b_ref, o_ref, xcol_ref):
        # xm_ref  : (bt, stride, cin, lt)   main phase-split input tile (native dtype)
        # xh_ref  : (bt, stride, cin, hp)   right halo (next hp phase lanes)
        # w_ref   : (groups, cout_g, kcin)  lane-dense im2col weight (tap-major)
        # b_ref   : (cout, 1)
        # o_ref   : (bt, cout, lt)
        # xcol_ref: (bt, kcin, lt)          VMEM im2col scratch (reused per group)
        bias = b_ref[...].astype(jnp.float32)            # f32 epilogue (v5e-safe)
        results = []
        for g in range(groups):                          # static python loop (tiny)
            c0 = g * cin_g
            # Build the im2col block for this group with direct Ref->Ref slice copies
            # (no concatenates, no whole-tile vreg loads).
            for kk in range(k):
                off = kk * dilation
                q, r = off // stride, off % stride
                row0 = kk * cin_g
                t0 = max(0, lt - q)                      # lanes [0, t0) come from main
                if t0 > 0:
                    xcol_ref[:, row0:row0 + cin_g, 0:t0] = (
                        xm_ref[:, r, c0:c0 + cin_g, q:q + t0])
                if t0 < lt:                              # lanes [t0, lt) come from halo
                    h0 = q - (lt - t0)
                    xcol_ref[:, row0:row0 + cin_g, t0:lt] = (
                        xh_ref[:, r, c0:c0 + cin_g, h0:q])
            # One fused MXU contraction of depth k*cin_g for the whole batch tile
            # (batched einsum, same structure as the flash-attention reference kernel).
            # groups is tiny, so this broadcast is a few KiB, not an in-loop hazard.
            w_g = jnp.broadcast_to(w_ref[g][None], (bt, cout_g, kcin))
            res = jnp.einsum('bck,bkl->bcl', w_g, xcol_ref[...],
                             preferred_element_type=jnp.float32)   # (bt, cout_g, lt)
            results.append(res)
        out = results[0] if groups == 1 else jnp.concatenate(results, axis=1)
        out = out + bias[None, :, :]                     # (bt, cout, lt) f32
        o_ref[...] = out.astype(o_ref.dtype)             # single dense full-block store

    return kernel


def conv1d_same_padding_pallas(x, weight, bias=None, stride=1, dilation=1, groups=1,
                               block_l=None, max_batch_tile=8, compute_dtype=None):
    """Matches torch conv1d_same_padding(input, weight, bias, stride, padding, dilation, groups)."""
    b, cin, l = x.shape
    cout, cin_g, k = weight.shape
    assert cin_g == cin // groups and cout % groups == 0
    cout_g = cout // groups
    kcin = k * cin_g

    if compute_dtype is not None:          # optional bf16 feed (precision trade-off)
        x = x.astype(compute_dtype)
        weight = weight.astype(compute_dtype)
    dtype = x.dtype
    isz = dtype.itemsize

    # --- replicate the PyTorch "same" padding arithmetic exactly -----------------------
    out_rows = (l + stride - 1) // stride
    padding_rows = max(0, (out_rows - 1) * stride + (k - 1) * dilation + 1 - l)
    pad_left = padding_rows // 2
    lpad_torch = l + padding_rows
    lout = (lpad_torch - ((k - 1) * dilation + 1)) // stride + 1

    # --- generation-aware budgets (proxy: per-core VMEM capacity) ----------------------
    vmem_cap = _vmem_capacity_bytes()
    if vmem_cap >= (100 << 20):            # v5e / v6e: 128 MiB VMEM, 1 TensorCore
        ws_budget, vmem_cap_limit, default_bl, two_tc = 96 << 20, 110 << 20, 2048, False
    else:                                  # v7x (64 MiB, 2 TCs) or unknown: conservative
        ws_budget, vmem_cap_limit, default_bl, two_tc = 26 << 20, 48 << 20, 1024, True
    if block_l is None:
        block_l = default_bl

    # --- tiling -------------------------------------------------------------------------
    qmax = ((k - 1) * dilation) // stride            # max right-halo shift (phase elems)
    hp = _round_up(max(qmax, 1), 128)                # halo lane width (>=128, covers qmax)
    assert qmax <= hp
    # Big lane tile (>=1024 by default) keeps the hp-lane halo re-read <= 1/8 overhead.
    lt = _round_up(min(max(block_l, 128), _round_up(lout, 128)), hp)

    def working_set(bt_, lt_):
        return (2 * bt_ * stride * cin * (lt_ + hp) * isz    # main+halo in, double-buffered
                + 2 * bt_ * cout * lt_ * isz                 # out, double-buffered
                + bt_ * kcin * lt_ * isz                     # im2col VMEM scratch
                + 2 * bt_ * cout * lt_ * 4                   # f32 result temporaries
                + 2 * (groups * cout_g * kcin + cout) * isz) # weight + bias

    bt = math.gcd(b, max_batch_tile)                 # batch packing (power of 2, divides b)
    while bt > 1 and working_set(bt, lt) > ws_budget:
        bt //= 2
    while lt > hp and working_set(bt, lt) > ws_budget:
        lt = max(hp, _round_up(lt // 2, hp))
    nlt = -(-lout // lt)
    if two_tc:                                       # keep both TensorCores fed on v7x
        while (b // bt) * nlt < 4 and bt > 1:
            bt //= 2
    nbt = b // bt
    lout_pad = nlt * lt
    halo_ratio = lt // hp

    # --- phase-split, padded input: P[b, r, c, t] = x_padded[b, c, t*stride + r] --------
    # TODO(synk): fold this pad / phase-split (an extra HBM pass) into the kernel.
    lphase = lout_pad + hp
    lin = stride * lphase
    pad_right = lin - pad_left - l
    assert pad_right >= 0
    xp = jnp.pad(x, ((0, 0), (0, 0), (pad_left, pad_right)))
    if stride == 1:
        xp = xp.reshape(b, 1, cin, lphase)           # pure reshape; no transpose copy
    else:
        xp = xp.reshape(b, cin, lphase, stride).transpose(0, 3, 1, 2)

    # lane-dense im2col weight (tap-major): (groups, cout_g, k*cin_g)
    w2 = weight.reshape(groups, cout_g, cin_g, k).transpose(0, 1, 3, 2)
    w2 = w2.reshape(groups, cout_g, kcin)
    if bias is None:
        bias = jnp.zeros((cout,), dtype)
    bias2 = bias.reshape(cout, 1)

    kernel = _make_kernel(bt, cin, cout, groups, k, stride, dilation, lt, hp)

    ws = working_set(bt, lt)
    vmem_limit = int(min(vmem_cap_limit, max(16 << 20, 2 * ws)))
    vmem_limit = max(vmem_limit, int(1.25 * ws))     # never starve the actual tiles

    out = pl.pallas_call(
        kernel,
        out_shape=jax.ShapeDtypeStruct((b, cout, lout_pad), dtype),
        grid_spec=pltpu.PrefetchScalarGridSpec(
            num_scalar_prefetch=0,
            grid=(nbt, nlt),
            in_specs=[
                # main input tile (phases x channels x lane tile)
                pl.BlockSpec((bt, stride, cin, lt), lambda bi, j: (bi, 0, 0, j)),
                # right halo: the next hp phase lanes of the same HBM array
                pl.BlockSpec((bt, stride, cin, hp),
                             lambda bi, j: (bi, 0, 0, (j + 1) * halo_ratio)),
                # resident (constant block index) weight and bias
                pl.BlockSpec((groups, cout_g, kcin), lambda bi, j: (0, 0, 0)),
                pl.BlockSpec((cout, 1), lambda bi, j: (0, 0)),
            ],
            out_specs=pl.BlockSpec((bt, cout, lt), lambda bi, j: (bi, 0, j)),
            scratch_shapes=[pltpu.VMEM((bt, kcin, lt), dtype)],
        ),
        compiler_params=pltpu.CompilerParams(
            dimension_semantics=("parallel", "parallel"),
            vmem_limit_bytes=vmem_limit),
    )(xp, xp, w2, bias2)

    if lout_pad != lout:
        out = out[:, :, :lout]
    return out


def _reference(x, weight, bias, stride, dilation, groups):
    """Pure-JAX reference reproducing the same PyTorch semantics."""
    b, cin, l = x.shape
    cout, _, k = weight.shape
    out_rows = (l + stride - 1) // stride
    padding_rows = max(0, (out_rows - 1) * stride + (k - 1) * dilation + 1 - l)
    pad_left = padding_rows // 2
    pad_right = padding_rows // 2 + (padding_rows % 2)
    x_pad = jnp.pad(x, ((0, 0), (0, 0), (pad_left, pad_right)))
    y = jax.lax.conv_general_dilated(
        x_pad, weight, window_strides=(stride,), padding="VALID",
        rhs_dilation=(dilation,), dimension_numbers=("NCH", "OIH", "NCH"),
        feature_group_count=groups)
    return y + bias[None, :, None]


if __name__ == "__main__":
    def run_case(key, b, cin, cout, l, k, stride, dilation, groups):
        kx, kw, kb = jax.random.split(key, 3)
        n = cin * k
        stdv = 1.0 / math.sqrt(n)
        x = jax.random.normal(kx, (b, cin, l), dtype=jnp.float32)
        w = jax.random.uniform(kw, (cout, cin // groups, k),
                               minval=-stdv, maxval=stdv, dtype=jnp.float32)
        bias = jax.random.uniform(kb, (cout,), minval=-stdv, maxval=stdv,
                                  dtype=jnp.float32)
        out = conv1d_same_padding_pallas(x, w, bias, stride=stride,
                                         dilation=dilation, groups=groups)
        out = jax.block_until_ready(out)
        ref = _reference(x, w, bias, stride, dilation, groups)
        assert out.shape == ref.shape, (out.shape, ref.shape)
        assert jnp.allclose(out, ref, atol=1e-4, rtol=1e-4), (
            "mismatch", float(jnp.max(jnp.abs(out - ref))))

    key = jax.random.PRNGKey(0)
    k0, k1, k2 = jax.random.split(key, 3)
    # Small shape consistent with the module: batch=2, in=4, out=8, L=16, K=3.
    run_case(k0, b=2, cin=4, cout=8, l=16, k=3, stride=1, dilation=1, groups=1)
    # Longer length + dilation.
    run_case(k1, b=2, cin=16, cout=32, l=640, k=5, stride=1, dilation=2, groups=1)
    # Stride > 1 (phase split) + groups.
    run_case(k2, b=2, cin=8, cout=16, l=300, k=3, stride=2, dilation=1, groups=2)

    print("KERNEL_OK")
</pallas_src>

<mosaic_0001>
module attributes {stable_mosaic.version = 11 : i64} {
  func.func @kernel(%arg0: i32, %arg1: i32, %arg2: memref<1x1x4x128xf32, #tpu.memory_space<vmem>>, %arg3: memref<1x1x4x128xf32, #tpu.memory_space<vmem>>, %arg4: memref<1x8x12xf32, #tpu.memory_space<vmem>>, %arg5: memref<8x1xf32, #tpu.memory_space<vmem>>, %arg6: memref<1x8x128xf32, #tpu.memory_space<vmem>>, %arg7: memref<1x12x128xf32, #tpu.memory_space<vmem>>) attributes {dimension_semantics = [#tpu.dimension_semantics<parallel>, #tpu.dimension_semantics<parallel>], iteration_bounds = array<i64: 2, 1>, scalar_prefetch = 0 : i64, scratch_operands = 1 : i64, tpu.core_type = #tpu.core_type<tc>, window_params = [{transform_indices = @transform_0, window_bounds = array<i64: 1, 1, 4, 128>}, {transform_indices = @transform_1, window_bounds = array<i64: 1, 1, 4, 128>}, {pipeline_mode = #tpu.pipeline_mode<synchronous>, transform_indices = @transform_2, window_bounds = array<i64: 1, 8, 12>}, {pipeline_mode = #tpu.pipeline_mode<synchronous>, transform_indices = @transform_3, window_bounds = array<i64: 8, 1>}, {transform_indices = @transform_4, window_bounds = array<i64: 1, 8, 128>}]} {
    %c0 = arith.constant 0 : index
    %c0_0 = arith.constant 0 : index
    %0 = vector.load %arg5[%c0, %c0_0] : memref<8x1xf32, #tpu.memory_space<vmem>>, vector<8x1xf32>
    %c0_1 = arith.constant 0 : index
    %c0_2 = arith.constant 0 : index
    %c0_3 = arith.constant 0 : index
    %c0_4 = arith.constant 0 : index
    %1 = vector.load %arg2[%c0_1, %c0_2, %c0_3, %c0_4] : memref<1x1x4x128xf32, #tpu.memory_space<vmem>>, vector<1x1x4x128xf32>
    %2 = vector.shape_cast %1 : vector<1x1x4x128xf32> to vector<1x4x128xf32>
    %c0_5 = arith.constant 0 : index
    %c0_6 = arith.constant 0 : index
    %c0_7 = arith.constant 0 : index
    %3 = vector.load %arg7[%c0_5, %c0_6, %c0_7] : memref<1x12x128xf32, #tpu.memory_space<vmem>>, vector<1x4x128xf32>
    tpu.vector_store %arg7[%c0_5, %c0_6, %c0_7], %2 {strides = array<i32>} : memref<1x12x128xf32, #tpu.memory_space<vmem>>, vector<1x4x128xf32>,
    %c0_8 = arith.constant 0 : index
    %c0_9 = arith.constant 0 : index
    %c0_10 = arith.constant 0 : index
    %c1 = arith.constant 1 : index
    %4 = vector.load %arg2[%c0_8, %c0_9, %c0_10, %c1] : memref<1x1x4x128xf32, #tpu.memory_space<vmem>>, vector<1x1x4x127xf32>
    %5 = vector.shape_cast %4 : vector<1x1x4x127xf32> to vector<1x4x127xf32>
    %c0_11 = arith.constant 0 : index
    %c4 = arith.constant 4 : index
    %c0_12 = arith.constant 0 : index
    %6 = vector.load %arg7[%c0_11, %c4, %c0_12] : memref<1x12x128xf32, #tpu.memory_space<vmem>>, vector<1x4x127xf32>
    tpu.vector_store %arg7[%c0_11, %c4, %c0_12], %5 {strides = array<i32>} : memref<1x12x128xf32, #tpu.memory_space<vmem>>, vector<1x4x127xf32>,
    %c0_13 = arith.constant 0 : index
    %c0_14 = arith.constant 0 : index
    %c0_15 = arith.constant 0 : index
    %c0_16 = arith.constant 0 : index
    %7 = vector.load %arg3[%c0_13, %c0_14, %c0_15, %c0_16] : memref<1x1x4x128xf32, #tpu.memory_space<vmem>>, vector<1x1x4x1xf32>
    %8 = vector.shape_cast %7 : vector<1x1x4x1xf32> to vector<1x4x1xf32>
    %c0_17 = arith.constant 0 : index
    %c4_18 = arith.constant 4 : index
    %c127 = arith.constant 127 : index
    %9 = vector.load %arg7[%c0_17, %c4_18, %c127] : memref<1x12x128xf32, #tpu.memory_space<vmem>>, vector<1x4x1xf32>
    tpu.vector_store %arg7[%c0_17, %c4_18, %c127], %8 {strides = array<i32>} : memref<1x12x128xf32, #tpu.memory_space<vmem>>, vector<1x4x1xf32>,
    %c0_19 = arith.constant 0 : index
    %c0_20 = arith.constant 0 : index
    %c0_21 = arith.constant 0 : index
    %c2 = arith.constant 2 : index
    %10 = vector.load %arg2[%c0_19, %c0_20, %c0_21, %c2] : memref<1x1x4x128xf32, #tpu.memory_space<vmem>>, vector<1x1x4x126xf32>
    %11 = vector.shape_cast %10 : vector<1x1x4x126xf32> to vector<1x4x126xf32>
    %c0_22 = arith.constant 0 : index
    %c8 = arith.constant 8 : index
    %c0_23 = arith.constant 0 : index
    %12 = vector.load %arg7[%c0_22, %c8, %c0_23] : memref<1x12x128xf32, #tpu.memory_space<vmem>>, vector<1x4x126xf32>
    tpu.vector_store %arg7[%c0_22, %c8, %c0_23], %11 {strides = array<i32>} : memref<1x12x128xf32, #tpu.memory_space<vmem>>, vector<1x4x126xf32>,
    %c0_24 = arith.constant 0 : index
    %c0_25 = arith.constant 0 : index
    %c0_26 = arith.constant 0 : index
    %c0_27 = arith.constant 0 : index
    %13 = vector.load %arg3[%c0_24, %c0_25, %c0_26, %c0_27] : memref<1x1x4x128xf32, #tpu.memory_space<vmem>>, vector<1x1x4x2xf32>
    %14 = vector.shape_cast %13 : vector<1x1x4x2xf32> to vector<1x4x2xf32>
    %c0_28 = arith.constant 0 : index
    %c8_29 = arith.constant 8 : index
    %c126 = arith.constant 126 : index
    %15 = vector.load %arg7[%c0_28, %c8_29, %c126] : memref<1x12x128xf32, #tpu.memory_space<vmem>>, vector<1x4x2xf32>
    tpu.vector_store %arg7[%c0_28, %c8_29, %c126], %14 {strides = array<i32>} : memref<1x12x128xf32, #tpu.memory_space<vmem>>, vector<1x4x2xf32>,
    %c0_30 = arith.constant 0 : index
    %c0_31 = arith.constant 0 : index
    %c0_32 = arith.constant 0 : index
    %16 = vector.load %arg4[%c0_30, %c0_31, %c0_32] : memref<1x8x12xf32, #tpu.memory_space<vmem>>, vector<1x8x12xf32>
    %17 = vector.shape_cast %16 : vector<1x8x12xf32> to vector<8x12xf32>
    %18 = vector.shape_cast %17 : vector<8x12xf32> to vector<1x8x12xf32>
    %c0_33 = arith.constant 0 : index
    %c0_34 = arith.constant 0 : index
    %c0_35 = arith.constant 0 : index
    %19 = vector.load %arg7[%c0_33, %c0_34, %c0_35] : memref<1x12x128xf32, #tpu.memory_space<vmem>>, vector<1x12x128xf32>
    "tpu.trace_start"() <{level = 10 : i32, message = "bck,bkl->bcl"}> : () -> ()
    %cst = arith.constant dense<0.000000e+00> : vector<1x8x128xf32>
    %20 = tpu.matmul %18, %19, %cst {dimension_numbers = #tpu.dot_dimension_numbers<[2], [1], [1], [2], [0, 0, 0, 1, 1, 2], [0], [0]>} : vector<1x8x12xf32>, vector<1x12x128xf32>, vector<1x8x128xf32> -> vector<1x8x128xf32>
    "tpu.trace_stop"() : () -> ()
    %21 = vector.shape_cast %0 : vector<8x1xf32> to vector<1x8x1xf32>
    %22 = vector.broadcast %21 : vector<1x8x1xf32> to vector<1x8x128xf32>
    %23 = arith.addf %20, %22 : vector<1x8x128xf32>
    %c0_36 = arith.constant 0 : index
    %c0_37 = arith.constant 0 : index
    %c0_38 = arith.constant 0 : index
    %24 = vector.load %arg6[%c0_36, %c0_37, %c0_38] : memref<1x8x128xf32, #tpu.memory_space<vmem>>, vector<1x8x128xf32>
    tpu.vector_store %arg6[%c0_36, %c0_37, %c0_38], %23 {strides = array<i32>} : memref<1x8x128xf32, #tpu.memory_space<vmem>>, vector<1x8x128xf32>,
    return
  }
  func.func @transform_0(%arg0: i32, %arg1: i32) -> (i32, i32, i32, i32) {
    %c0_i32 = arith.constant 0 : i32
    %c0_i32_0 = arith.constant 0 : i32
    %c0_i32_1 = arith.constant 0 : i32
    return %arg0, %c0_i32, %c0_i32_0, %arg1 : i32, i32, i32, i32
  }
  func.func @transform_1(%arg0: i32, %arg1: i32) -> (i32, i32, i32, i32) {
    %c1_i32 = arith.constant 1 : i32
    %0 = arith.addi %arg1, %c1_i32 : i32
    %c1_i32_0 = arith.constant 1 : i32
    %1 = arith.muli %0, %c1_i32_0 : i32
    %c0_i32 = arith.constant 0 : i32
    %c0_i32_1 = arith.constant 0 : i32
    %c0_i32_2 = arith.constant 0 : i32
    return %arg0, %c0_i32, %c0_i32_1, %1 : i32, i32, i32, i32
  }
  func.func @transform_2(%arg0: i32, %arg1: i32) -> (i32, i32, i32) {
    %c0_i32 = arith.constant 0 : i32
    %c0_i32_0 = arith.constant 0 : i32
    %c0_i32_1 = arith.constant 0 : i32
    %c0_i32_2 = arith.constant 0 : i32
    return %c0_i32, %c0_i32_0, %c0_i32_1 : i32, i32, i32
  }
  func.func @transform_3(%arg0: i32, %arg1: i32) -> (i32, i32) {
    %c0_i32 = arith.constant 0 : i32
    %c0_i32_0 = arith.constant 0 : i32
    %c0_i32_1 = arith.constant 0 : i32
    return %c0_i32, %c0_i32_0 : i32, i32
  }
  func.func @transform_4(%arg0: i32, %arg1: i32) -> (i32, i32, i32) {
    %c0_i32 = arith.constant 0 : i32
    %c0_i32_0 = arith.constant 0 : i32
    return %arg0, %c0_i32, %arg1 : i32, i32, i32
  }
}

</mosaic_0001>

<llo_original>
// kernel: tpu_custom_call.1
$region0: #{tpu_custom_call.1}
  #allocation0 [shape = 'u32[]', space=smem, size = 0x4, offset = 0x4, fixed_abs, tag = 'smem constant byte address 0x4 - core index']
  #allocation1 [shape = 'u32[144,128]{1,0:T(1,128)}', space=vmem, size = 0x12000, scoped, tag = 'internal scratch']
  #allocation2 [shape = 'f32[1,12,128]{2,1,0:T(8,128)}', space=vmem, size = 0x2000, scoped, tag = 'scratch operand']
  %s0 = inlined_call_operand.hbm [shape: f32[2,1,4,256], index: 0, kind: input, shape index: {}]
  %s1 = inlined_call_operand.hbm [shape: f32[2,1,4,256], index: 1, kind: input, shape index: {}]
  %s2 = inlined_call_operand.vmem [shape: f32[1,8,12], index: 2, kind: input, shape index: {}]
  %s3 = inlined_call_operand.vmem [shape: f32[8,1], index: 3, kind: input, shape index: {}]
  %s4 = inlined_call_operand.hbm [shape: f32[2,8,128], index: 4, kind: output, shape index: {}]
  %s5 = sld [smem:[#allocation0]]
  $region57: #{tpu_custom_call.1} parent=0
    _
  %s7 = ssub.s32 1, %s5
  %s8 = scalar_select 0, %s7, %s5
  $region1: #{tpu_custom_call.1} parent=0
    #allocation3 [shape = 'u8[4096]{0}', space=vmem, size = 0x1000, scoped, tag = 'input window, operand 0']
    #allocation4 [shape = 's32[2]{0}', space=sflag, size = 0x8, scoped, tag = 'scoped memory for tpu_custom_call.1']
    #allocation5 [shape = 's32[2]{0}', space=sflag, size = 0x8, scoped, tag = 'scoped memory for tpu_custom_call.1']
    #allocation6 [shape = 'u8[4096]{0}', space=vmem, size = 0x1000, scoped, tag = 'input window, operand 1']
    #allocation7 [shape = 's32[2]{0}', space=sflag, size = 0x8, scoped, tag = 'scoped memory for tpu_custom_call.1']
    #allocation8 [shape = 'u8[8192]{0}', space=vmem, size = 0x2000, scoped, tag = 'output window, operand 0']
    %9 = vsyncpa [#allocation4], 0
    %s10 = scalar_lea.sflag [#allocation4], 1
    %11 = vsyncpa %s10, 0
    %12 = vsyncpa [#allocation7], 0
    %s13 = scalar_lea.sflag [#allocation7], 1
    %14 = vsyncpa %s13, 0
    %15 = vsyncpa [#allocation5], 0
    %s16 = scalar_lea.sflag [#allocation5], 1
    %17 = vsyncpa %s16, 0
    loop: start=0, step=1, limit=4
    $region2: #{tpu_custom_call.1} parent=1 // loop_pre_header
      _
    $region3: #{tpu_custom_call.1} parent=1 // loop_header
      %s19 = sphi 0, %s23
      %p20 = scmp.ge.s32.totalorder %s19, 4
      %s26 = sphi 0, %s38
      %s27 = sphi 0, %s34
      %s28 = sphi 0, %s26
      %s29 = sphi 0, %s27
      %s30 = sphi 0, %s28
      %s31 = sphi 0, %s29
      %s43 = sphi 0, %s45
      %s46 = sphi 0, %s43
      %s47 = sphi 0, %s46
      %s63 = sphi 0, %s47
      %s73 = sphi 0, %s75
      %s76 = sphi 0, %s73
      %s77 = sphi 0, %s76
      %s93 = sphi 0, %s77
      %s97 = sphi 0, %s97
      %s99 = sphi 0, %s97
      %s100 = sphi 0, %s99
      %s114 = sphi 0, %s100
      %s118 = sphi 0, %s118
      %s120 = sphi 0, %s118
      %s121 = sphi 0, %s120
      %s135 = sphi 0, %s121
      %s143 = sphi 0, %s145
      %s146 = sphi 0, %s143
      %s147 = sphi 0, %s146
      %s163 = sphi 0, %s147
    $region4: #{tpu_custom_call.1} parent=1 // loop_header_branch
      %22 = sbr.rel (%p20) target = $region8
    $region5: #{tpu_custom_call.1} parent=1 // loop_body
      %s24 = ssub.s32 %s19, 1
      %s25 = ssub.s32 %s19, 2
      %s32 = sadd.s32 1, %s27
      %p33 = scmp.ge.s32.totalorder %s32, 1
      %s34 = scalar_select %p33, 0, %s32
      %s35 = sadd.s32 1, %s26
      %s36 = scalar_select %p33, %s35, %s26
      %p37 = scmp.ge.s32.totalorder %s36, 2
      %s38 = scalar_select %p37, 0, %s36
      %s39 = ssub.s32 %s26, %s38
      %s40 = ssub.s32 %s27, %s34
      %s41 = sor.u32 %s39, %s40
      %p42 = scmp.eq.s32.totalorder %s41, 0
      %s44 = sadd.s32 %s43, 1
      %s45 = scalar_select %p42, %s43, %s44
      %p48 = pneg %p42
      %p49 = scmp.eq.s32.totalorder %s19, 1
      %p50 = por %p48, %p49
      %p51 = scmp.ne.s32.totalorder %s43, %s46
      %p52 = scmp.eq.s32.totalorder %s19, 0
      %p53 = por %p51, %p52
      %p54 = scmp.ne.s32.totalorder %s43, %s46
      %p55 = scmp.eq.s32.totalorder %s24, 1
      %p56 = por %p54, %p55
      %p57 = scmp.ne.s32.totalorder %s46, %s47
      %p58 = scmp.eq.s32.totalorder %s24, 0
      %p59 = por %p57, %p58
      %p60 = scmp.ne.s32.totalorder %s46, %s47
      %p61 = scmp.eq.s32.totalorder %s25, 1
      %p62 = por %p60, %p61
      %p64 = scmp.ne.s32.totalorder %s47, %s63
      %p65 = scmp.eq.s32.totalorder %s25, 0
      %p66 = por %p64, %p65
      %s67 = sadd.s32 %s27, 1
      %s68 = sadd.s32 %s34, 1
      %s69 = ssub.s32 %s26, %s38
      %s70 = ssub.s32 %s67, %s68
      %s71 = sor.u32 %s69, %s70
      %p72 = scmp.eq.s32.totalorder %s71, 0
      %s74 = sadd.s32 %s73, 1
      %s75 = scalar_select %p72, %s73, %s74
      %p78 = pneg %p72
      %p79 = scmp.eq.s32.totalorder %s19, 1
      %p80 = por %p78, %p79
      %p81 = scmp.ne.s32.totalorder %s73, %s76
      %p82 = scmp.eq.s32.totalorder %s19, 0
      %p83 = por %p81, %p82
      %p84 = scmp.ne.s32.totalorder %s73, %s76
      %p85 = scmp.eq.s32.totalorder %s24, 1
      %p86 = por %p84, %p85
      %p87 = scmp.ne.s32.totalorder %s76, %s77
      %p88 = scmp.eq.s32.totalorder %s24, 0
      %p89 = por %p87, %p88
      %p90 = scmp.ne.s32.totalorder %s76, %s77
      %p91 = scmp.eq.s32.totalorder %s25, 1
      %p92 = por %p90, %p91
      %p94 = scmp.ne.s32.totalorder %s77, %s93
      %p95 = scmp.eq.s32.totalorder %s25, 0
      %p96 = por %p94, %p95
      %s98 = sadd.s32 %s97, 1
      %p101 = scmp.eq.s32.totalorder %s19, 1
      %p102 = scmp.ne.s32.totalorder %s97, %s99
      %p103 = scmp.eq.s32.totalorder %s19, 0
      %p104 = por %p102, %p103
      %p105 = scmp.ne.s32.totalorder %s97, %s99
      %p106 = scmp.eq.s32.totalorder %s24, 1
      %p107 = por %p105, %p106
      %p108 = scmp.ne.s32.totalorder %s99, %s100
      %p109 = scmp.eq.s32.totalorder %s24, 0
      %p110 = por %p108, %p109
      %p111 = scmp.ne.s32.totalorder %s99, %s100
      %p112 = scmp.eq.s32.totalorder %s25, 1
      %p113 = por %p111, %p112
      %p115 = scmp.ne.s32.totalorder %s100, %s114
      %p116 = scmp.eq.s32.totalorder %s25, 0
      %p117 = por %p115, %p116
      %s119 = sadd.s32 %s118, 1
      %p122 = scmp.eq.s32.totalorder %s19, 1
      %p123 = scmp.ne.s32.totalorder %s118, %s120
      %p124 = scmp.eq.s32.totalorder %s19, 0
      %p125 = por %p123, %p124
      %p126 = scmp.ne.s32.totalorder %s118, %s120
      %p127 = scmp.eq.s32.totalorder %s24, 1
      %p128 = por %p126, %p127
      %p129 = scmp.ne.s32.totalorder %s120, %s121
      %p130 = scmp.eq.s32.totalorder %s24, 0
      %p131 = por %p129, %p130
      %p132 = scmp.ne.s32.totalorder %s120, %s121
      %p133 = scmp.eq.s32.totalorder %s25, 1
      %p134 = por %p132, %p133
      %p136 = scmp.ne.s32.totalorder %s121, %s135
      %p137 = scmp.eq.s32.totalorder %s25, 0
      %p138 = por %p136, %p137
      %s139 = ssub.s32 %s26, %s38
      %s140 = ssub.s32 %s27, %s34
      %s141 = sor.u32 %s139, %s140
      %p142 = scmp.eq.s32.totalorder %s141, 0
      %s144 = sadd.s32 %s143, 1
      %s145 = scalar_select %p142, %s143, %s144
      %p148 = pneg %p142
      %p149 = scmp.eq.s32.totalorder %s19, 1
      %p150 = por %p148, %p149
      %p151 = scmp.ne.s32.totalorder %s143, %s146
      %p152 = scmp.eq.s32.totalorder %s19, 0
      %p153 = por %p151, %p152
      %p154 = scmp.ne.s32.totalorder %s143, %s146
      %p155 = scmp.eq.s32.totalorder %s24, 1
      %p156 = por %p154, %p155
      %p157 = scmp.ne.s32.totalorder %s146, %s147
      %p158 = scmp.eq.s32.totalorder %s24, 0
      %p159 = por %p157, %p158
      %p160 = scmp.ne.s32.totalorder %s146, %s147
      %p161 = scmp.eq.s32.totalorder %s25, 1
      %p162 = por %p160, %p161
      %p164 = scmp.ne.s32.totalorder %s147, %s163
      %p165 = scmp.eq.s32.totalorder %s25, 0
      %p166 = por %p164, %p165
      %p167 = scmp.le.s32.totalorder 1, %s19
      %p168 = scmp.lt.s32.totalorder %s19, 3
      %p169 = pnand %p167, %p168
      %p170 = pneg %p169
      // Predicated region
      $region9: #{tpu_custom_call.1} parent=5 // pred_check
        _
      $region10: #{tpu_custom_call.1} parent=5 // pred_check_branch
        %172 = sbr.rel (%p169) target = $region12
      $region11: #{tpu_custom_call.1} parent=5 // pred_region
        %s173 = ssub.s32 %s19, 1
        // Predicated region
        $region13: #{tpu_custom_call.1} parent=11 // pred_check
          %p174 = pneg %p110
        $region14: #{tpu_custom_call.1} parent=11 // pred_check_branch
          %176 = sbr.rel (%p174) target = $region16
        $region15: #{tpu_custom_call.1} parent=11 // pred_region
          _
        $region16: #{tpu_custom_call.1} parent=11 // pred_fallthru
          _
        // Predicated region
        $region17: #{tpu_custom_call.1} parent=11 // pred_check
          %p177 = pneg %p131
        $region18: #{tpu_custom_call.1} parent=11 // pred_check_branch
          %179 = sbr.rel (%p177) target = $region20
        $region19: #{tpu_custom_call.1} parent=11 // pred_region
          _
        $region20: #{tpu_custom_call.1} parent=11 // pred_fallthru
          _
      $region12: #{tpu_custom_call.1} parent=5 // pred_fallthru
        _
      %p180 = scmp.lt.s32.totalorder %s19, 2
      // Predicated region
      $region21: #{tpu_custom_call.1} parent=5 // pred_check
        %p181 = pneg %p180
      $region22: #{tpu_custom_call.1} parent=5 // pred_check_branch
        %183 = sbr.rel (%p181) target = $region24
      $region23: #{tpu_custom_call.1} parent=5 // pred_region
        // Predicated region
        $region25: #{tpu_custom_call.1} parent=23 // pred_check
          %p184 = pneg %p53
        $region26: #{tpu_custom_call.1} parent=23 // pred_check_branch
          %186 = sbr.rel (%p184) target = $region28
        $region27: #{tpu_custom_call.1} parent=23 // pred_region
          %s187 = sand.u32 %s43, 1
          %s188 = scalar_lea.sflag [#allocation4], %s187
          %s189 = sand.u32 %s43, 1
          %s190 = smul.addr %s189, 4
          %s191 = scalar_lea.vmem [#allocation3], %s190
          %s193 = ssub.s32 64, 64
          %194 = vsyncadd %s188, %s193
          %s195 = smul.addr %s26, 2
          %s196 = sadd.s32 %s27, %s195
          %s197 = smul.addr %s196, 64
          %s198 = scalar_lea.hbm %s0, %s197
          %s200 = sshll.u32 %s191, 4
          %s201 = int_to_ptr.vmem [resolvable:$true] %s200
          %203 = dma.hbm_to_vmem [thread:$0]  %s198, 64, %s201, %s188
        $region28: #{tpu_custom_call.1} parent=23 // pred_fallthru
          _
        // Predicated region
        $region29: #{tpu_custom_call.1} parent=23 // pred_check
          %p204 = pneg %p83
        $region30: #{tpu_custom_call.1} parent=23 // pred_check_branch
          %206 = sbr.rel (%p204) target = $region32
        $region31: #{tpu_custom_call.1} parent=23 // pred_region
          %s207 = sand.u32 %s73, 1
          %s208 = scalar_lea.sflag [#allocation7], %s207
          %s209 = sand.u32 %s73, 1
          %s210 = smul.addr %s209, 4
          %s211 = scalar_lea.vmem [#allocation6], %s210
          %s212 = sadd.s32 %s27, 1
          %s214 = ssub.s32 64, 64
          %215 = vsyncadd %s208, %s214
          %s216 = smul.addr %s26, 2
          %s217 = sadd.s32 %s212, %s216
          %s218 = smul.addr %s217, 64
          %s219 = scalar_lea.hbm %s1, %s218
          %s221 = sshll.u32 %s211, 4
          %s222 = int_to_ptr.vmem [resolvable:$true] %s221
          %224 = dma.hbm_to_vmem [thread:$0]  %s219, 64, %s222, %s208
        $region32: #{tpu_custom_call.1} parent=23 // pred_fallthru
          _
      $region24: #{tpu_custom_call.1} parent=5 // pred_fallthru
        _
      %p225 = scmp.le.s32.totalorder 1, %s19
      %p226 = scmp.lt.s32.totalorder %s19, 3
      %p227 = pnand %p225, %p226
      %p228 = pneg %p227
      // Predicated region
      $region33: #{tpu_custom_call.1} parent=5 // pred_check
        _
      $region34: #{tpu_custom_call.1} parent=5 // pred_check_branch
        %230 = sbr.rel (%p227) target = $region36
      $region35: #{tpu_custom_call.1} parent=5 // pred_region
        %s231 = ssub.s32 %s19, 1
        %s232 = sand.u32 %s46, 1
        %s233 = scalar_lea.sflag [#allocation4], %s232
        %s234 = sand.u32 %s46, 1
        %s235 = smul.addr %s234, 4
        %s236 = scalar_lea.vmem [#allocation3], %s235
        // Predicated region
        $region37: #{tpu_custom_call.1} parent=35 // pred_check
          %p237 = pneg %p59
        $region38: #{tpu_custom_call.1} parent=35 // pred_check_branch
          %239 = sbr.rel (%p237) target = $region40
        $region39: #{tpu_custom_call.1} parent=35 // pred_region
          %240 = dma.done %s233, 64
        $region40: #{tpu_custom_call.1} parent=35 // pred_fallthru
          _
        %s241 = sand.u32 %s76, 1
        %s242 = scalar_lea.sflag [#allocation7], %s241
        %s243 = sand.u32 %s76, 1
        %s244 = smul.addr %s243, 4
        %s245 = scalar_lea.vmem [#allocation6], %s244
        // Predicated region
        $region41: #{tpu_custom_call.1} parent=35 // pred_check
          %p246 = pneg %p89
        $region42: #{tpu_custom_call.1} parent=35 // pred_check_branch
          %248 = sbr.rel (%p246) target = $region44
        $region43: #{tpu_custom_call.1} parent=35 // pred_region
          %249 = dma.done %s242, 64
        $region44: #{tpu_custom_call.1} parent=35 // pred_fallthru
          _
        %s250 = sand.u32 %s46, 1
        %s251 = scalar_lea.sflag [#allocation4], %s250
        %s252 = sand.u32 %s46, 1
        %s253 = smul.addr %s252, 4
        %s254 = scalar_lea.vmem [#allocation3], %s253
        %p255 = pneg %p59
        %p256 = pneg %p56
        %s257 = sand.u32 %s76, 1
        %s258 = scalar_lea.sflag [#allocation7], %s257
        %s259 = sand.u32 %s76, 1
        %s260 = smul.addr %s259, 4
        %s261 = scalar_lea.vmem [#allocation6], %s260
        %p262 = pneg %p89
        %p263 = pneg %p86
        %p264 = pneg %p110
        %p265 = pneg %p107
        %p266 = pneg %p131
        %p267 = pneg %p128
        %p268 = pneg %p159
        %p269 = pneg %p156
        %s270 = sand.u32 %s146, 1
        %s271 = scalar_lea.sflag [#allocation5], %s270
        %s272 = sand.u32 %s146, 1
        %s273 = smul.addr %s272, 8
        %s274 = scalar_lea.vmem [#allocation8], %s273
        %s275 = sadd.s32 %s29, 1
        %v276 = vld [vmem:[%s3] sm:$0xff]
        %v277 = vld [vmem:[%s236] sm:$0xf]
        %278 = vst [vmem:[#allocation2] sm:$0xf] %v277
        %v279 = vld [vmem:[%s236] sm:$0xf]
        %281 = vrot.lane.b32.xlu0 %v279, 127
        %v282 = vpop.permute.xlu0 %281
        %vm284 = vcmask 1035264
        %285 = vst.msk [vmem:[#allocation2 + $0x4] sm:$0xf] %vm284, %v282
        %v286 = vld [vmem:[%s245] sm:$0xf]
        %288 = vrot.lane.b32.xlu0 %v286, 127
        %v289 = vpop.permute.xlu0 %288
        %vm291 = vcmask 1044472
        %292 = vst.msk [vmem:[#allocation2 + $0x4] sm:$0xf] %vm291, %v289
        %v293 = vld [vmem:[%s236] sm:$0xf]
        %295 = vrot.lane.b32.xlu0 %v293, 126
        %v296 = vpop.permute.xlu0 %295
        %vm298 = vcmask 1027072
        %299 = vst.msk [vmem:[#allocation2 + $0x8] sm:$0xf] %vm298, %v296
        %v300 = vld [vmem:[%s245] sm:$0xf]
        %302 = vrot.lane.b32.xlu0 %v300, 126
        %v303 = vpop.permute.xlu0 %302
        %vm305 = vcmask 1044464
        %306 = vst.msk [vmem:[#allocation2 + $0x8] sm:$0xf] %vm305, %v303
        %v307 = vld [vmem:[%s2] sm:$0xff]
        %v308 = vld [vmem:[#allocation2] sm:$0xff]
        %v309 = vld [vmem:[#allocation2 + $0x8] sm:$0xf]
        %311 = vset.pattern.permute.xlu0 0
        %312 = vperm.xlu0 %311, %v276
        %v313 = vpop.permute.xlu0 %312
        %vm315 = vcmask 97280
        %v317 = vsel %vm315, %v307, 0
        %vm319 = vcmask 1043456
        %v321 = vsel %vm319, %v309, 0
        %323 = vmatprep.subr.mxu0 0.0
        %324 = vmatpush1.msra.mxu0 0.0
        %325 = vmatprep.subr.mxu0 0.0
        %326 = vmatpush1.msra.mxu0 0.0
        %327 = vmatprep.subr.mxu0 0.0
        %328 = vmatpush1.msra.mxu0 0.0
        %329 = vmatprep.subr.mxu0 0.0
        %330 = vmatpush1.msra.mxu0 0.0
        %331 = vmatprep.subr.mxu0 0.0
        %332 = vmatpush1.msra.mxu0 0.0
        %333 = vmatprep.subr.mxu0 0.0
        %334 = vmatpush1.msra.mxu0 0.0
        %335 = vmatprep.subr.mxu0 0.0
        %336 = vmatpush1.msra.mxu0 0.0
        %337 = vmatprep.subr.mxu0 0.0
        %338 = vmatpush1.msra.mxu0 0.0
        %339 = vmatprep.subr.mxu0 0.0
        %340 = vmatpush1.msra.mxu0 0.0
        %341 = vmatprep.subr.mxu0 0.0
        %342 = vmatpush1.msra.mxu0 0.0
        %343 = vmatprep.subr.mxu0 0.0
        %344 = vmatpush1.msra.mxu0 0.0
        %345 = vmatprep.subr.mxu0 0.0
        %346 = vmatpush1.msra.mxu0 0.0
        %347 = vmatprep.subr.mxu0 0.0
        %348 = vmatpush1.msra.mxu0 0.0
        %349 = vmatprep.subr.mxu0 0.0
        %350 = vmatpush1.msra.mxu0 0.0
        %351 = vmatprep.subr.mxu0 0.0
        %352 = vmatpush1.msra.mxu0 %v321
        %353 = vmatprep.subr.mxu0 0.0
        %354 = vmatpush1.msra.mxu0 %v308
        %355 = vmatprep.subr.mxu0 0.0
        %356 = vmatpush2.msra.mxu0 0.0
        %357 = vmatprep.subr.mxu0 0.0
        %358 = vmatpush2.msra.mxu0 0.0
        %359 = vmatprep.subr.mxu0 0.0
        %360 = vmatpush2.msra.mxu0 0.0
        %361 = vmatprep.subr.mxu0 0.0
        %362 = vmatpush2.msra.mxu0 0.0
        %363 = vmatprep.subr.mxu0 0.0
        %364 = vmatpush2.msra.mxu0 0.0
        %365 = vmatprep.subr.mxu0 0.0
        %366 = vmatpush2.msra.mxu0 0.0
        %367 = vmatprep.subr.mxu0 0.0
        %368 = vmatpush2.msra.mxu0 0.0
        %369 = vmatprep.subr.mxu0 0.0
        %370 = vmatpush2.msra.mxu0 0.0
        %371 = vmatprep.subr.mxu0 0.0
        %372 = vmatpush2.msra.mxu0 0.0
        %373 = vmatprep.subr.mxu0 0.0
        %374 = vmatpush2.msra.mxu0 0.0
        %375 = vmatprep.subr.mxu0 0.0
        %376 = vmatpush2.msra.mxu0 0.0
        %377 = vmatprep.subr.mxu0 0.0
        %378 = vmatpush2.msra.mxu0 0.0
        %379 = vmatprep.subr.mxu0 0.0
        %380 = vmatpush2.msra.mxu0 0.0
        %381 = vmatprep.subr.mxu0 0.0
        %382 = vmatpush2.msra.mxu0 0.0
        %383 = vmatprep.subr.mxu0 0.0
        %384 = vmatpush2.msra.mxu0 0.0
        %385 = vmatprep.subr.mxu0 0.0
        %386 = vmatpush2.msra.mxu0 0.0
        %387 = vmatprep.mubr.f32.mxu0 0.0
        %388 = vmatmul.mubr.f32.gmra.mxu0 %v317
        %v389 = vpop.f32.mrf.mxu0
        %v390 = vadd.f32 %v313, %v389
        %v391 = vpop.f32.mrf.mxu0
        %392 = vdwg.mxu0
        %393 = vst [vmem:[%s274] sm:$0xff] %v390
        %s394 = sand.u32 %s146, 1
        %s395 = scalar_lea.sflag [#allocation5], %s394
        %s396 = sand.u32 %s146, 1
        %s397 = smul.addr %s396, 8
        %s398 = scalar_lea.vmem [#allocation8], %s397
        // Predicated region
        $region45: #{tpu_custom_call.1} parent=35 // pred_check
          %p399 = pneg %p156
        $region46: #{tpu_custom_call.1} parent=35 // pred_check_branch
          %401 = sbr.rel (%p399) target = $region48
        $region47: #{tpu_custom_call.1} parent=35 // pred_region
          %s403 = ssub.s32 128, 128
          %404 = vsyncadd %s395, %s403
          %s405 = sadd.s32 %s29, %s28
          %s406 = smul.addr %s405, 128
          %s407 = scalar_lea.hbm %s4, %s406
          %s409 = sshll.u32 %s398, 4
          %s410 = int_to_ptr.vmem [resolvable:$true] %s409
          %412 = dma.vmem_to_hbm [thread:$0]  %s410, 128, %s407, %s395
        $region48: #{tpu_custom_call.1} parent=35 // pred_fallthru
          _
      $region36: #{tpu_custom_call.1} parent=5 // pred_fallthru
        _
      %p413 = scmp.le.s32.totalorder 2, %s19
      // Predicated region
      $region49: #{tpu_custom_call.1} parent=5 // pred_check
        %p414 = pneg %p413
      $region50: #{tpu_custom_call.1} parent=5 // pred_check_branch
        %416 = sbr.rel (%p414) target = $region52
      $region51: #{tpu_custom_call.1} parent=5 // pred_region
        %s417 = ssub.s32 %s19, 2
        // Predicated region
        $region53: #{tpu_custom_call.1} parent=51 // pred_check
          %p418 = pneg %p162
        $region54: #{tpu_custom_call.1} parent=51 // pred_check_branch
          %420 = sbr.rel (%p418) target = $region56
        $region55: #{tpu_custom_call.1} parent=51 // pred_region
          %s421 = sand.u32 %s147, 1
          %s422 = scalar_lea.sflag [#allocation5], %s421
          %s423 = sand.u32 %s147, 1
          %s424 = smul.addr %s423, 8
          %s425 = scalar_lea.vmem [#allocation8], %s424
          %426 = dma.done %s422, 128
        $region56: #{tpu_custom_call.1} parent=51 // pred_fallthru
          _
      $region52: #{tpu_custom_call.1} parent=5 // pred_fallthru
        _
    $region6: #{tpu_custom_call.1} parent=1 // loop_footer
      %s23 = sadd.s32 1, %s19
    $region7: #{tpu_custom_call.1} parent=1 // loop_footer_branch
      %18 = sbr.rel target = $region3
    $region8: #{tpu_custom_call.1} parent=1 // loop_exit
      _
    %427 = vsyncpa [#allocation4], 1
    %s428 = scalar_lea.sflag [#allocation4], 1
    %429 = vsyncpa %s428, 1
    %430 = vsyncpa [#allocation7], 1
    %s431 = scalar_lea.sflag [#allocation7], 1
    %432 = vsyncpa %s431, 1
    %433 = vsyncpa [#allocation5], 1
    %s434 = scalar_lea.sflag [#allocation5], 1
    %435 = vsyncpa %s434, 1

</llo_original>
